<compile_context>
chip_gen: v6e
topology: v6e:2x2x1
jax: 0.10.0
libtpu: 0.0.40
codegen_flags: <defaults>
</compile_context>

<pallas_src>
import functools

import jax
import jax.numpy as jnp
from jax.experimental import pallas as pl
from jax.experimental.pallas import tpu as pltpu

_LN_EPS = 1e-12


def _round_up(x: int, m: int) -> int:
    return ((x + m - 1) // m) * m


def _feature_resizer_kernel(x_ref, w_ref, p_ref, o_ref, *, do_ln: bool):
    # x_ref: (tm, C1) input rows, native dtype (bf16 stays bf16)
    # w_ref: (C1, C2) weight pre-transposed to (in, out), native dtype
    # p_ref: (3, C2)  f32 params: row 0 = linear bias, 1 = LN gamma, 2 = LN beta
    # o_ref: (tm, C2)
    #
    # Linear: MXU accumulates natively into f32; operands are not pre-cast.
    y = jnp.dot(x_ref[...], w_ref[...], preferred_element_type=jnp.float32)
    p = p_ref[...]
    y = y + p[0:1, :]

    if do_ln:
        # LayerNorm over the full (unpadded) feature axis; biased variance,
        # eps=1e-12, all math in f32.  Two-pass moments for numerical safety;
        # this op is DMA/store bound at the shapes this module runs at.
        mean = jnp.mean(y, axis=-1, keepdims=True)
        centered = y - mean
        var = jnp.mean(centered * centered, axis=-1, keepdims=True)
        y = centered * jax.lax.rsqrt(var + _LN_EPS)
        y = y * p[1:2, :] + p[2:3, :]

    # Dropout: inference mode -> identity.
    # TODO(synk): training-mode dropout (pltpu.prng_seed / prng_random_bits) not implemented.
    o_ref[...] = y.astype(o_ref.dtype)


def prepare_feature_resizer_params(weight, bias, ln_gamma=None, ln_beta=None):
    """One-time parameter prep, hoisted out of the per-forward hot path.

    weight: (C2, C1) torch nn.Linear layout -> returned transposed (C1, C2).
    bias / ln_gamma / ln_beta: (C2,) -> packed into a single (3, C2) f32 array.
    Weight keeps its original dtype (document bf16 parity separately if you
    choose to down-cast it for MXU throughput).
    """
    C2 = weight.shape[0]
    if ln_gamma is None:
        ln_gamma = jnp.ones((C2,), jnp.float32)
    if ln_beta is None:
        ln_beta = jnp.zeros((C2,), jnp.float32)
    w_t = jnp.asarray(weight).T  # (C1, C2)
    params = jnp.stack(
        [
            jnp.asarray(bias, jnp.float32),
            jnp.asarray(ln_gamma, jnp.float32),
            jnp.asarray(ln_beta, jnp.float32),
        ],
        axis=0,
    )  # (3, C2)
    return w_t, params


def _vmem_capacity_bytes() -> int:
    try:
        return int(pltpu.get_tpu_info().vmem_capacity_bytes)
    except Exception:
        return 64 * 1024 * 1024  # conservative: v7x per-TensorCore VMEM


def feature_resizer(x, w_t, params, *, do_ln: bool = True, tile_m: int = 512):
    """Fused Linear -> LayerNorm(eps=1e-12) -> Dropout(eval) forward.

    x:      (..., C1)  embeddings, feature axis last
    w_t:    (C1, C2)   pre-transposed linear weight (see prepare_feature_resizer_params)
    params: (3, C2)    f32 [bias; ln_gamma; ln_beta]
    Returns (..., C2) in x.dtype.
    """
    *lead, C1 = x.shape
    C2 = w_t.shape[1]
    M = 1
    for d in lead:
        M *= d
    x2d = x.reshape(M, C1)  # collapsing leading dims is free

    x_item = jnp.dtype(x.dtype).itemsize
    w_item = jnp.dtype(w_t.dtype).itemsize
    # Sublane packing of the row axis: 8 rows for 32-bit, 16 for bf16, 32 for int8/fp8.
    pack = max(8, 32 // x_item)

    tm = max(pack, min(_round_up(tile_m, pack), _round_up(M, pack)))

    # VMEM working set: double-buffered x/out tiles + (single-buffered) resident
    # weight + packed params (sublane padded).  Shrink tm if it would not fit in
    # ~85% of the real chip capacity (v7x only has 64 MiB per TensorCore).
    capacity = _vmem_capacity_bytes()
    budget = int(0.85 * capacity)

    def working_set(tm_, w_bufs):
        return (2 * tm_ * C1 * x_item + 2 * tm_ * C2 * x_item
                + w_bufs * C1 * C2 * w_item + 2 * 8 * C2 * 4)

    while working_set(tm, 1) > budget and tm > pack:
        tm = max(pack, _round_up(tm // 2, pack))
    # TODO(synk): if the weight alone exceeds the VMEM budget (huge C1*C2 on v7x),
    # fall back to a K-tiled grid with an f32 accumulator scratch + pl.when epilogue.

    # Megacore (v7x has 2 TensorCores): make sure the parallel M axis has at
    # least 2 grid steps whenever there is enough work to split.
    if pl.cdiv(M, tm) < 2 and M > pack:
        tm = min(tm, _round_up(pl.cdiv(M, 2), pack))

    grid = (pl.cdiv(M, tm),)
    vmem_limit = int(min(max(2 * working_set(tm, 2), 32 * 1024 * 1024), budget))

    cost = pl.CostEstimate(
        flops=2 * M * C1 * C2,
        transcendentals=M,  # one rsqrt per row
        bytes_accessed=(M * C1 * x_item + C1 * C2 * w_item
                        + 3 * C2 * 4 + M * C2 * x_item),
    )

    kernel = functools.partial(_feature_resizer_kernel, do_ln=do_ln)

    def call(single_buffer: bool):
        if single_buffer:
            # Grid-invariant operands: DMA'd once, keep a single VMEM buffer.
            w_spec = pl.BlockSpec((C1, C2), lambda i: (0, 0),
                                  pipeline_mode=pl.Buffered(1))
            p_spec = pl.BlockSpec((3, C2), lambda i: (0, 0),
                                  pipeline_mode=pl.Buffered(1))
        else:
            w_spec = pl.BlockSpec((C1, C2), lambda i: (0, 0))
            p_spec = pl.BlockSpec((3, C2), lambda i: (0, 0))
        return pl.pallas_call(
            kernel,
            out_shape=jax.ShapeDtypeStruct((M, C2), x.dtype),
            grid=grid,
            in_specs=[
                pl.BlockSpec((tm, C1), lambda i: (i, 0)),  # x row tile
                w_spec,                                     # weight (grid-invariant)
                p_spec,                                     # bias/gamma/beta (grid-invariant)
            ],
            out_specs=pl.BlockSpec((tm, C2), lambda i: (i, 0)),
            compiler_params=pltpu.CompilerParams(
                dimension_semantics=("parallel",),
                vmem_limit_bytes=vmem_limit,
            ),
            cost_estimate=cost,
        )(x2d, w_t, params)

    try:
        out2d = call(single_buffer=True)
    except Exception:
        # Fallback for jax versions without pipeline_mode / Buffered(1) support.
        out2d = call(single_buffer=False)

    return out2d.reshape(*lead, C2)


if __name__ == "__main__":
    # Small shapes consistent with the module's forward:
    # (batch, seq, C1) -> (batch, seq, C2).
    batch, seq = 2, 8
    input_feat_size, output_feat_size = 32, 64

    key = jax.random.PRNGKey(0)
    k_x, k_w, k_b = jax.random.split(key, 3)

    x = jax.random.normal(k_x, (batch, seq, input_feat_size), dtype=jnp.float32)

    # Deterministic synthetic parameters (shapes match nn.Linear / nn.LayerNorm).
    bound = 1.0 / (input_feat_size ** 0.5)
    weight = jax.random.uniform(
        k_w, (output_feat_size, input_feat_size), minval=-bound, maxval=bound,
        dtype=jnp.float32)
    bias = jax.random.uniform(
        k_b, (output_feat_size,), minval=-bound, maxval=bound, dtype=jnp.float32)
    ln_gamma = jnp.ones((output_feat_size,), dtype=jnp.float32)
    ln_beta = jnp.zeros((output_feat_size,), dtype=jnp.float32)

    # One-time parameter prep (hoisted out of the hot path), then the fused kernel.
    w_t, params = prepare_feature_resizer_params(weight, bias, ln_gamma, ln_beta)
    out = feature_resizer(x, w_t, params, do_ln=True)
    jax.block_until_ready(out)

    # Reference: Linear -> LayerNorm(eps=1e-12) -> Dropout(eval) in plain JAX.
    y_ref = x @ weight.T + bias
    mean = y_ref.mean(-1, keepdims=True)
    var = ((y_ref - mean) ** 2).mean(-1, keepdims=True)
    ref = (y_ref - mean) / jnp.sqrt(var + 1e-12) * ln_gamma + ln_beta

    # Tolerance accounts for TPU default f32 matmul precision (bf16-based MXU
    # passes) differing between the Pallas kernel and the XLA reference dot.
    assert out.shape == ref.shape, "shape mismatch vs reference"
    assert jnp.allclose(out, ref, atol=1e-2, rtol=1e-2), "mismatch vs reference"

    print("KERNEL_OK")
</pallas_src>

<mosaic_0001>
module attributes {stable_mosaic.version = 11 : i64} {
  func.func @_feature_resizer_kernel(%arg0: i32, %arg1: memref<8x32xf32, #tpu.memory_space<vmem>>, %arg2: memref<32x64xf32, #tpu.memory_space<vmem>>, %arg3: memref<3x64xf32, #tpu.memory_space<vmem>>, %arg4: memref<8x64xf32, #tpu.memory_space<vmem>>) attributes {dimension_semantics = [#tpu.dimension_semantics<parallel>], iteration_bounds = array<i64: 2>, scalar_prefetch = 0 : i64, scratch_operands = 0 : i64, tpu.core_type = #tpu.core_type<tc>, window_params = [{transform_indices = @transform_0, window_bounds = array<i64: 8, 32>}, {pipeline_mode = #tpu.pipeline_mode<synchronous>, transform_indices = @transform_1, window_bounds = array<i64: 32, 64>}, {pipeline_mode = #tpu.pipeline_mode<synchronous>, transform_indices = @transform_2, window_bounds = array<i64: 3, 64>}, {transform_indices = @transform_3, window_bounds = array<i64: 8, 64>}]} {
    %c0 = arith.constant 0 : index
    %c0_0 = arith.constant 0 : index
    %0 = vector.load %arg1[%c0, %c0_0] : memref<8x32xf32, #tpu.memory_space<vmem>>, vector<8x32xf32>
    %c0_1 = arith.constant 0 : index
    %c0_2 = arith.constant 0 : index
    %1 = vector.load %arg2[%c0_1, %c0_2] : memref<32x64xf32, #tpu.memory_space<vmem>>, vector<32x64xf32>
    %cst = arith.constant dense<0.000000e+00> : vector<8x64xf32>
    %2 = tpu.matmul %0, %1, %cst {dimension_numbers = #tpu.dot_dimension_numbers<[1], [0], [0], [1], [0, 0, 1, 1], [], []>} : vector<8x32xf32>, vector<32x64xf32>, vector<8x64xf32> -> vector<8x64xf32>
    %c0_3 = arith.constant 0 : index
    %c0_4 = arith.constant 0 : index
    %3 = vector.load %arg3[%c0_3, %c0_4] : memref<3x64xf32, #tpu.memory_space<vmem>>, vector<3x64xf32>
    %4 = vector.extract_strided_slice %3 {offsets = [0, 0], sizes = [1, 64], strides = [1, 1]} : vector<3x64xf32> to vector<1x64xf32>
    %5 = vector.broadcast %4 : vector<1x64xf32> to vector<8x64xf32>
    %6 = arith.addf %2, %5 : vector<8x64xf32>
    %cst_5 = arith.constant dense<0.000000e+00> : vector<8xf32>
    %7 = vector.multi_reduction <add>, %6, %cst_5 [1] : vector<8x64xf32> to vector<8xf32>
    %8 = vector.shape_cast %7 : vector<8xf32> to vector<8x1xf32>
    %cst_6 = arith.constant 6.400000e+01 : f32
    %9 = vector.broadcast %cst_6 : f32 to vector<8x1xf32>
    %10 = arith.divf %8, %9 : vector<8x1xf32>
    %11 = vector.broadcast %10 : vector<8x1xf32> to vector<8x64xf32>
    %12 = arith.subf %6, %11 : vector<8x64xf32>
    %13 = arith.mulf %12, %12 : vector<8x64xf32>
    %cst_7 = arith.constant dense<0.000000e+00> : vector<8xf32>
    %14 = vector.multi_reduction <add>, %13, %cst_7 [1] : vector<8x64xf32> to vector<8xf32>
    %15 = vector.shape_cast %14 : vector<8xf32> to vector<8x1xf32>
    %cst_8 = arith.constant 6.400000e+01 : f32
    %16 = vector.broadcast %cst_8 : f32 to vector<8x1xf32>
    %17 = arith.divf %15, %16 : vector<8x1xf32>
    %cst_9 = arith.constant 9.99999996E-13 : f32
    %18 = vector.broadcast %cst_9 : f32 to vector<8x1xf32>
    %19 = arith.addf %17, %18 : vector<8x1xf32>
    %20 = math.rsqrt %19 : vector<8x1xf32>
    %21 = vector.broadcast %20 : vector<8x1xf32> to vector<8x64xf32>
    %22 = arith.mulf %12, %21 : vector<8x64xf32>
    %23 = vector.extract_strided_slice %3 {offsets = [1, 0], sizes = [1, 64], strides = [1, 1]} : vector<3x64xf32> to vector<1x64xf32>
    %24 = vector.broadcast %23 : vector<1x64xf32> to vector<8x64xf32>
    %25 = arith.mulf %22, %24 : vector<8x64xf32>
    %26 = vector.extract_strided_slice %3 {offsets = [2, 0], sizes = [1, 64], strides = [1, 1]} : vector<3x64xf32> to vector<1x64xf32>
    %27 = vector.broadcast %26 : vector<1x64xf32> to vector<8x64xf32>
    %28 = arith.addf %25, %27 : vector<8x64xf32>
    %c0_10 = arith.constant 0 : index
    %c0_11 = arith.constant 0 : index
    %29 = vector.load %arg4[%c0_10, %c0_11] : memref<8x64xf32, #tpu.memory_space<vmem>>, vector<8x64xf32>
    tpu.vector_store %arg4[%c0_10, %c0_11], %28 {strides = array<i32>} : memref<8x64xf32, #tpu.memory_space<vmem>>, vector<8x64xf32>,
    return
  }
  func.func @transform_0(%arg0: i32) -> (i32, i32) {
    %c0_i32 = arith.constant 0 : i32
    %c0_i32_0 = arith.constant 0 : i32
    return %arg0, %c0_i32 : i32, i32
  }
  func.func @transform_1(%arg0: i32) -> (i32, i32) {
    %c0_i32 = arith.constant 0 : i32
    %c0_i32_0 = arith.constant 0 : i32
    %c0_i32_1 = arith.constant 0 : i32
    return %c0_i32, %c0_i32_0 : i32, i32
  }
  func.func @transform_2(%arg0: i32) -> (i32, i32) {
    %c0_i32 = arith.constant 0 : i32
    %c0_i32_0 = arith.constant 0 : i32
    %c0_i32_1 = arith.constant 0 : i32
    return %c0_i32, %c0_i32_0 : i32, i32
  }
  func.func @transform_3(%arg0: i32) -> (i32, i32) {
    %c0_i32 = arith.constant 0 : i32
    %c0_i32_0 = arith.constant 0 : i32
    return %arg0, %c0_i32 : i32, i32
  }
}

module attributes {stable_mosaic.version = 11 : i64} {
  func.func @_feature_resizer_kernel(%arg0: i32, %arg1: memref<8x32xf32, #tpu.memory_space<vmem>>, %arg2: memref<32x64xf32, #tpu.memory_space<vmem>>, %arg3: memref<3x64xf32, #tpu.memory_space<vmem>>, %arg4: memref<8x64xf32, #tpu.memory_space<vmem>>) attributes {dimension_semantics = [#tpu.dimension_semantics<parallel>], iteration_bounds = array<i64: 2>, scalar_prefetch = 0 : i64, scratch_operands = 0 : i64, tpu.core_type = #tpu.core_type<tc>, window_params = [{transform_indices = @transform_0, window_bounds = array<i64: 8, 32>}, {pipeline_mode = #tpu.pipeline_mode<synchronous>, transform_indices = @transform_1, window_bounds = array<i64: 32, 64>}, {pipeline_mode = #tpu.pipeline_mode<synchronous>, transform_indices = @transform_2, window_bounds = array<i64: 3, 64>}, {transform_indices = @transform_3, window_bounds = array<i64: 8, 64>}]} {
    %c0 = arith.constant 0 : index
    %c0_0 = arith.constant 0 : index
    %0 = vector.load %arg1[%c0, %c0_0] : memref<8x32xf32, #tpu.memory_space<vmem>>, vector<8x32xf32>
    %c0_1 = arith.constant 0 : index
    %c0_2 = arith.constant 0 : index
    %1 = vector.load %arg2[%c0_1, %c0_2] : memref<32x64xf32, #tpu.memory_space<vmem>>, vector<32x64xf32>
    %cst = arith.constant dense<0.000000e+00> : vector<8x64xf32>
    %2 = tpu.matmul %0, %1, %cst {dimension_numbers = #tpu.dot_dimension_numbers<[1], [0], [0], [1], [0, 0, 1, 1], [], []>} : vector<8x32xf32>, vector<32x64xf32>, vector<8x64xf32> -> vector<8x64xf32>
    %c0_3 = arith.constant 0 : index
    %c0_4 = arith.constant 0 : index
    %3 = vector.load %arg3[%c0_3, %c0_4] : memref<3x64xf32, #tpu.memory_space<vmem>>, vector<3x64xf32>
    %4 = vector.extract_strided_slice %3 {offsets = [0, 0], sizes = [1, 64], strides = [1, 1]} : vector<3x64xf32> to vector<1x64xf32>
    %5 = vector.broadcast %4 : vector<1x64xf32> to vector<8x64xf32>
    %6 = arith.addf %2, %5 : vector<8x64xf32>
    %cst_5 = arith.constant dense<0.000000e+00> : vector<8xf32>
    %7 = vector.multi_reduction <add>, %6, %cst_5 [1] : vector<8x64xf32> to vector<8xf32>
    %8 = vector.shape_cast %7 : vector<8xf32> to vector<8x1xf32>
    %cst_6 = arith.constant 6.400000e+01 : f32
    %9 = vector.broadcast %cst_6 : f32 to vector<8x1xf32>
    %10 = arith.divf %8, %9 : vector<8x1xf32>
    %11 = vector.broadcast %10 : vector<8x1xf32> to vector<8x64xf32>
    %12 = arith.subf %6, %11 : vector<8x64xf32>
    %13 = arith.mulf %12, %12 : vector<8x64xf32>
    %cst_7 = arith.constant dense<0.000000e+00> : vector<8xf32>
    %14 = vector.multi_reduction <add>, %13, %cst_7 [1] : vector<8x64xf32> to vector<8xf32>
    %15 = vector.shape_cast %14 : vector<8xf32> to vector<8x1xf32>
    %cst_8 = arith.constant 6.400000e+01 : f32
    %16 = vector.broadcast %cst_8 : f32 to vector<8x1xf32>
    %17 = arith.divf %15, %16 : vector<8x1xf32>
    %cst_9 = arith.constant 9.99999996E-13 : f32
    %18 = vector.broadcast %cst_9 : f32 to vector<8x1xf32>
    %19 = arith.addf %17, %18 : vector<8x1xf32>
    %20 = math.rsqrt %19 : vector<8x1xf32>
    %21 = vector.broadcast %20 : vector<8x1xf32> to vector<8x64xf32>
    %22 = arith.mulf %12, %21 : vector<8x64xf32>
    %23 = vector.extract_strided_slice %3 {offsets = [1, 0], sizes = [1, 64], strides = [1, 1]} : vector<3x64xf32> to vector<1x64xf32>
    %24 = vector.broadcast %23 : vector<1x64xf32> to vector<8x64xf32>
    %25 = arith.mulf %22, %24 : vector<8x64xf32>
    %26 = vector.extract_strided_slice %3 {offsets = [2, 0], sizes = [1, 64], strides = [1, 1]} : vector<3x64xf32> to vector<1x64xf32>
    %27 = vector.broadcast %26 : vector<1x64xf32> to vector<8x64xf32>
    %28 = arith.addf %25, %27 : vector<8x64xf32>
    %c0_10 = arith.constant 0 : index
    %c0_11 = arith.constant 0 : index
    %29 = vector.load %arg4[%c0_10, %c0_11] : memref<8x64xf32, #tpu.memory_space<vmem>>, vector<8x64xf32>
    tpu.vector_store %arg4[%c0_10, %c0_11], %28 {strides = array<i32>} : memref<8x64xf32, #tpu.memory_space<vmem>>, vector<8x64xf32>,
    return
  }
  func.func @transform_0(%arg0: i32) -> (i32, i32) {
    %c0_i32 = arith.constant 0 : i32
    %c0_i32_0 = arith.constant 0 : i32
    return %arg0, %c0_i32 : i32, i32
  }
  func.func @transform_1(%arg0: i32) -> (i32, i32) {
    %c0_i32 = arith.constant 0 : i32
    %c0_i32_0 = arith.constant 0 : i32
    %c0_i32_1 = arith.constant 0 : i32
    return %c0_i32, %c0_i32_0 : i32, i32
  }
  func.func @transform_2(%arg0: i32) -> (i32, i32) {
    %c0_i32 = arith.constant 0 : i32
    %c0_i32_0 = arith.constant 0 : i32
    %c0_i32_1 = arith.constant 0 : i32
    return %c0_i32, %c0_i32_0 : i32, i32
  }
  func.func @transform_3(%arg0: i32) -> (i32, i32) {
    %c0_i32 = arith.constant 0 : i32
    %c0_i32_0 = arith.constant 0 : i32
    return %arg0, %c0_i32 : i32, i32
  }
}

</mosaic_0001>

<llo_original>
// kernel: tpu_custom_call.1
$region0: #{tpu_custom_call.1}
  #allocation0 [shape = 'u32[]', space=smem, size = 0x4, offset = 0x4, fixed_abs, tag = 'smem constant byte address 0x4 - core index']
  #allocation1 [shape = 'u32[144,128]{1,0:T(1,128)}', space=vmem, size = 0x12000, scoped, tag = 'internal scratch']
  %s0 = inlined_call_operand.hbm [shape: f32[16,32], index: 0, kind: input, shape index: {}]
  %s1 = inlined_call_operand.hbm [shape: f32[32,64], index: 1, kind: input, shape index: {}]
  %s2 = inlined_call_operand.hbm [shape: f32[3,64], index: 2, kind: input, shape index: {}]
  %s3 = inlined_call_operand.hbm [shape: f32[16,64], index: 3, kind: output, shape index: {}]
  %s4 = sld [smem:[#allocation0]]
  $region57: #{tpu_custom_call.1} parent=0
    _
  %s6 = ssub.s32 1, %s4
  %s7 = scalar_select 0, %s6, %s4
  $region1: #{tpu_custom_call.1} parent=0
    #allocation2 [shape = 'u8[8192]{0}', space=vmem, size = 0x2000, scoped, tag = 'input window, operand 0']
    #allocation3 [shape = 's32[2]{0}', space=sflag, size = 0x8, scoped, tag = 'scoped memory for tpu_custom_call.1']
    #allocation4 [shape = 's32[2]{0}', space=sflag, size = 0x8, scoped, tag = 'scoped memory for tpu_custom_call.1']
    #allocation5 [shape = 'u8[16384]{0}', space=vmem, size = 0x4000, scoped, tag = 'input window, operand 1, single buffered']
    #allocation6 [shape = 's32[1]{0}', space=sflag, size = 0x4, scoped, tag = 'scoped memory for tpu_custom_call.1']
    #allocation7 [shape = 'u8[2048]{0}', space=vmem, size = 0x800, scoped, tag = 'input window, operand 2, single buffered']
    #allocation8 [shape = 'u8[8192]{0}', space=vmem, size = 0x2000, scoped, tag = 'output window, operand 0']
    %8 = vsyncpa [#allocation3], 0
    %s9 = scalar_lea.sflag [#allocation3], 1
    %10 = vsyncpa %s9, 0
    %11 = vsyncpa [#allocation6], 0
    %12 = vsyncpa [#allocation4], 0
    %s13 = scalar_lea.sflag [#allocation4], 1
    %14 = vsyncpa %s13, 0
    loop: start=0, step=1, limit=4
    $region2: #{tpu_custom_call.1} parent=1 // loop_pre_header
      _
    $region3: #{tpu_custom_call.1} parent=1 // loop_header
      %s16 = sphi 0, %s20
      %p17 = scmp.ge.s32.totalorder %s16, 4
      %s26 = sphi 0, %s28
      %s29 = sphi 0, %s26
      %s30 = sphi 0, %s29
      %s46 = sphi 0, %s30
      %s50 = sphi 0, %s50
      %s52 = sphi 0, %s50
      %s53 = sphi 0, %s52
      %s67 = sphi 0, %s53
      %s71 = sphi 0, %s71
      %s73 = sphi 0, %s71
      %s74 = sphi 0, %s73
      %s88 = sphi 0, %s74
      %s94 = sphi 0, %s96
      %s97 = sphi 0, %s94
      %s98 = sphi 0, %s97
      %s114 = sphi 0, %s98
    $region4: #{tpu_custom_call.1} parent=1 // loop_header_branch
      %19 = sbr.rel (%p17) target = $region8
    $region5: #{tpu_custom_call.1} parent=1 // loop_body
      %s21 = ssub.s32 %s16, 1
      %s22 = ssub.s32 %s16, 2
      %s23 = sadd.s32 %s16, 1
      %s24 = ssub.s32 %s16, %s23
      %p25 = scmp.eq.s32.totalorder %s24, 0
      %s27 = sadd.s32 %s26, 1
      %s28 = scalar_select %p25, %s26, %s27
      %p31 = pneg %p25
      %p32 = scmp.eq.s32.totalorder %s16, 1
      %p33 = por %p31, %p32
      %p34 = scmp.ne.s32.totalorder %s26, %s29
      %p35 = scmp.eq.s32.totalorder %s16, 0
      %p36 = por %p34, %p35
      %p37 = scmp.ne.s32.totalorder %s26, %s29
      %p38 = scmp.eq.s32.totalorder %s21, 1
      %p39 = por %p37, %p38
      %p40 = scmp.ne.s32.totalorder %s29, %s30
      %p41 = scmp.eq.s32.totalorder %s21, 0
      %p42 = por %p40, %p41
      %p43 = scmp.ne.s32.totalorder %s29, %s30
      %p44 = scmp.eq.s32.totalorder %s22, 1
      %p45 = por %p43, %p44
      %p47 = scmp.ne.s32.totalorder %s30, %s46
      %p48 = scmp.eq.s32.totalorder %s22, 0
      %p49 = por %p47, %p48
      %s51 = sadd.s32 %s50, 1
      %p54 = scmp.eq.s32.totalorder %s16, 1
      %p55 = scmp.ne.s32.totalorder %s50, %s52
      %p56 = scmp.eq.s32.totalorder %s16, 0
      %p57 = por %p55, %p56
      %p58 = scmp.ne.s32.totalorder %s50, %s52
      %p59 = scmp.eq.s32.totalorder %s21, 1
      %p60 = por %p58, %p59
      %p61 = scmp.ne.s32.totalorder %s52, %s53
      %p62 = scmp.eq.s32.totalorder %s21, 0
      %p63 = por %p61, %p62
      %p64 = scmp.ne.s32.totalorder %s52, %s53
      %p65 = scmp.eq.s32.totalorder %s22, 1
      %p66 = por %p64, %p65
      %p68 = scmp.ne.s32.totalorder %s53, %s67
      %p69 = scmp.eq.s32.totalorder %s22, 0
      %p70 = por %p68, %p69
      %s72 = sadd.s32 %s71, 1
      %p75 = scmp.eq.s32.totalorder %s16, 1
      %p76 = scmp.ne.s32.totalorder %s71, %s73
      %p77 = scmp.eq.s32.totalorder %s16, 0
      %p78 = por %p76, %p77
      %p79 = scmp.ne.s32.totalorder %s71, %s73
      %p80 = scmp.eq.s32.totalorder %s21, 1
      %p81 = por %p79, %p80
      %p82 = scmp.ne.s32.totalorder %s73, %s74
      %p83 = scmp.eq.s32.totalorder %s21, 0
      %p84 = por %p82, %p83
      %p85 = scmp.ne.s32.totalorder %s73, %s74
      %p86 = scmp.eq.s32.totalorder %s22, 1
      %p87 = por %p85, %p86
      %p89 = scmp.ne.s32.totalorder %s74, %s88
      %p90 = scmp.eq.s32.totalorder %s22, 0
      %p91 = por %p89, %p90
      %s92 = ssub.s32 %s16, %s23
      %p93 = scmp.eq.s32.totalorder %s92, 0
      %s95 = sadd.s32 %s94, 1
      %s96 = scalar_select %p93, %s94, %s95
      %p99 = pneg %p93
      %p100 = scmp.eq.s32.totalorder %s16, 1
      %p101 = por %p99, %p100
      %p102 = scmp.ne.s32.totalorder %s94, %s97
      %p103 = scmp.eq.s32.totalorder %s16, 0
      %p104 = por %p102, %p103
      %p105 = scmp.ne.s32.totalorder %s94, %s97
      %p106 = scmp.eq.s32.totalorder %s21, 1
      %p107 = por %p105, %p106
      %p108 = scmp.ne.s32.totalorder %s97, %s98
      %p109 = scmp.eq.s32.totalorder %s21, 0
      %p110 = por %p108, %p109
      %p111 = scmp.ne.s32.totalorder %s97, %s98
      %p112 = scmp.eq.s32.totalorder %s22, 1
      %p113 = por %p111, %p112
      %p115 = scmp.ne.s32.totalorder %s98, %s114
      %p116 = scmp.eq.s32.totalorder %s22, 0
      %p117 = por %p115, %p116
      %p118 = scmp.le.s32.totalorder 1, %s16
      %p119 = scmp.lt.s32.totalorder %s16, 3
      %p120 = pnand %p118, %p119
      %p121 = pneg %p120
      // Predicated region
      $region9: #{tpu_custom_call.1} parent=5 // pred_check
        _
      $region10: #{tpu_custom_call.1} parent=5 // pred_check_branch
        %123 = sbr.rel (%p120) target = $region12
      $region11: #{tpu_custom_call.1} parent=5 // pred_region
        %s124 = ssub.s32 %s16, 1
        // Predicated region
        $region13: #{tpu_custom_call.1} parent=11 // pred_check
          %p125 = pneg %p63
        $region14: #{tpu_custom_call.1} parent=11 // pred_check_branch
          %127 = sbr.rel (%p125) target = $region16
        $region15: #{tpu_custom_call.1} parent=11 // pred_region
          %s129 = ssub.s32 512, 512
          %130 = vsyncadd [#allocation6], %s129
          %s131 = sshll.u32 [#allocation5], 4
          %s132 = int_to_ptr.vmem [resolvable:$true] %s131
          %137 = dma.hbm_to_vmem [thread:$0]  %s1, 512, %s132, [#allocation6], 128, 128, 8
        $region16: #{tpu_custom_call.1} parent=11 // pred_fallthru
          _
        // Predicated region
        $region17: #{tpu_custom_call.1} parent=11 // pred_check
          %p138 = pneg %p84
        $region18: #{tpu_custom_call.1} parent=11 // pred_check_branch
          %140 = sbr.rel (%p138) target = $region20
        $region19: #{tpu_custom_call.1} parent=11 // pred_region
          %s142 = ssub.s32 64, 64
          %143 = vsyncadd [#allocation6], %s142
          %s145 = sshll.u32 [#allocation7], 4
          %s146 = int_to_ptr.vmem [resolvable:$true] %s145
          %148 = dma.hbm_to_vmem [thread:$0]  %s2, 64, %s146, [#allocation6]
        $region20: #{tpu_custom_call.1} parent=11 // pred_fallthru
          _
      $region12: #{tpu_custom_call.1} parent=5 // pred_fallthru
        _
      %p149 = scmp.lt.s32.totalorder %s16, 2
      // Predicated region
      $region21: #{tpu_custom_call.1} parent=5 // pred_check
        %p150 = pneg %p149
      $region22: #{tpu_custom_call.1} parent=5 // pred_check_branch
        %152 = sbr.rel (%p150) target = $region24
      $region23: #{tpu_custom_call.1} parent=5 // pred_region
        // Predicated region
        $region25: #{tpu_custom_call.1} parent=23 // pred_check
          %p153 = pneg %p36
        $region26: #{tpu_custom_call.1} parent=23 // pred_check_branch
          %155 = sbr.rel (%p153) target = $region28
        $region27: #{tpu_custom_call.1} parent=23 // pred_region
          %s156 = sand.u32 %s26, 1
          %s157 = scalar_lea.sflag [#allocation3], %s156
          %s158 = sand.u32 %s26, 1
          %s159 = smul.addr %s158, 8
          %s160 = scalar_lea.vmem [#allocation2], %s159
          %s162 = ssub.s32 128, 128
          %163 = vsyncadd %s157, %s162
          %s164 = smul.addr %s16, 128
          %s165 = scalar_lea.hbm %s0, %s164
          %s167 = sshll.u32 %s160, 4
          %s168 = int_to_ptr.vmem [resolvable:$true] %s167
          %170 = dma.hbm_to_vmem [thread:$0]  %s165, 128, %s168, %s157
        $region28: #{tpu_custom_call.1} parent=23 // pred_fallthru
          _
      $region24: #{tpu_custom_call.1} parent=5 // pred_fallthru
        _
      %p171 = scmp.le.s32.totalorder 1, %s16
      %p172 = scmp.lt.s32.totalorder %s16, 3
      %p173 = pnand %p171, %p172
      %p174 = pneg %p173
      // Predicated region
      $region29: #{tpu_custom_call.1} parent=5 // pred_check
        _
      $region30: #{tpu_custom_call.1} parent=5 // pred_check_branch
        %176 = sbr.rel (%p173) target = $region32
      $region31: #{tpu_custom_call.1} parent=5 // pred_region
        %s177 = ssub.s32 %s16, 1
        %s178 = sand.u32 %s29, 1
        %s179 = scalar_lea.sflag [#allocation3], %s178
        %s180 = sand.u32 %s29, 1
        %s181 = smul.addr %s180, 8
        %s182 = scalar_lea.vmem [#allocation2], %s181
        // Predicated region
        $region33: #{tpu_custom_call.1} parent=31 // pred_check
          %p183 = pneg %p42
        $region34: #{tpu_custom_call.1} parent=31 // pred_check_branch
          %185 = sbr.rel (%p183) target = $region36
        $region35: #{tpu_custom_call.1} parent=31 // pred_region
          %186 = dma.done %s179, 128
        $region36: #{tpu_custom_call.1} parent=31 // pred_fallthru
          _
        // Predicated region
        $region37: #{tpu_custom_call.1} parent=31 // pred_check
          %p187 = pneg %p63
        $region38: #{tpu_custom_call.1} parent=31 // pred_check_branch
          %189 = sbr.rel (%p187) target = $region40
        $region39: #{tpu_custom_call.1} parent=31 // pred_region
          %190 = dma.done [#allocation6], 512
        $region40: #{tpu_custom_call.1} parent=31 // pred_fallthru
          _
        // Predicated region
        $region41: #{tpu_custom_call.1} parent=31 // pred_check
          %p191 = pneg %p84
        $region42: #{tpu_custom_call.1} parent=31 // pred_check_branch
          %193 = sbr.rel (%p191) target = $region44
        $region43: #{tpu_custom_call.1} parent=31 // pred_region
          %194 = dma.done [#allocation6], 64
        $region44: #{tpu_custom_call.1} parent=31 // pred_fallthru
          _
        %s195 = sand.u32 %s29, 1
        %s196 = scalar_lea.sflag [#allocation3], %s195
        %s197 = sand.u32 %s29, 1
        %s198 = smul.addr %s197, 8
        %s199 = scalar_lea.vmem [#allocation2], %s198
        %p200 = pneg %p42
        %p201 = pneg %p39
        %p202 = pneg %p63
        %p203 = pneg %p60
        %p204 = pneg %p84
        %p205 = pneg %p81
        %p206 = pneg %p110
        %p207 = pneg %p107
        %s208 = sand.u32 %s97, 1
        %s209 = scalar_lea.sflag [#allocation4], %s208
        %s210 = sand.u32 %s97, 1
        %s211 = smul.addr %s210, 8
        %s212 = scalar_lea.vmem [#allocation8], %s211
        %v213 = vld [vmem:[%s182] sm:$0xff]
        %v214 = vld [vmem:[#allocation5] sm:$0xff]
        %v215 = vld [vmem:[#allocation5 + $0x8] sm:$0xff]
        %v216 = vld [vmem:[#allocation5 + $0x10] sm:$0xff]
        %v217 = vld [vmem:[#allocation5 + $0x18] sm:$0xff]
        %v218 = vld [vmem:[#allocation7] sm:$0x7]
        %v219 = vlaneseq
        %v220 = vshrl.u32 %v219, 7
        %v221 = vsub.s32 0, %v220
        %v222 = vrot.slane %v218, %v221
        %vm223 = vcmask 261120
        %v225 = vsel %vm223, %v213, 0
        %227 = vmatprep.subr.mxu0 0.0
        %228 = vmatpush1.msra.mxu0 0.0
        %229 = vmatprep.subr.mxu0 0.0
        %230 = vmatpush1.msra.mxu0 0.0
        %231 = vmatprep.subr.mxu0 0.0
        %232 = vmatpush1.msra.mxu0 0.0
        %233 = vmatprep.subr.mxu0 0.0
        %234 = vmatpush1.msra.mxu0 0.0
        %235 = vmatprep.subr.mxu0 0.0
        %236 = vmatpush1.msra.mxu0 0.0
        %237 = vmatprep.subr.mxu0 0.0
        %238 = vmatpush1.msra.mxu0 0.0
        %239 = vmatprep.subr.mxu0 0.0
        %240 = vmatpush1.msra.mxu0 0.0
        %241 = vmatprep.subr.mxu0 0.0
        %242 = vmatpush1.msra.mxu0 0.0
        %243 = vmatprep.subr.mxu0 0.0
        %244 = vmatpush1.msra.mxu0 0.0
        %245 = vmatprep.subr.mxu0 0.0
        %246 = vmatpush1.msra.mxu0 0.0
        %247 = vmatprep.subr.mxu0 0.0
        %248 = vmatpush1.msra.mxu0 0.0
        %249 = vmatprep.subr.mxu0 0.0
        %250 = vmatpush1.msra.mxu0 0.0
        %251 = vmatprep.subr.mxu0 0.0
        %252 = vmatpush1.msra.mxu0 %v217
        %253 = vmatprep.subr.mxu0 0.0
        %254 = vmatpush1.msra.mxu0 %v216
        %255 = vmatprep.subr.mxu0 0.0
        %256 = vmatpush1.msra.mxu0 %v215
        %257 = vmatprep.subr.mxu0 0.0
        %258 = vmatpush1.msra.mxu0 %v214
        %259 = vmatprep.subr.mxu0 0.0
        %260 = vmatpush2.msra.mxu0 0.0
        %261 = vmatprep.subr.mxu0 0.0
        %262 = vmatpush2.msra.mxu0 0.0
        %263 = vmatprep.subr.mxu0 0.0
        %264 = vmatpush2.msra.mxu0 0.0
        %265 = vmatprep.subr.mxu0 0.0
        %266 = vmatpush2.msra.mxu0 0.0
        %267 = vmatprep.subr.mxu0 0.0
        %268 = vmatpush2.msra.mxu0 0.0
        %269 = vmatprep.subr.mxu0 0.0
        %270 = vmatpush2.msra.mxu0 0.0
        %271 = vmatprep.subr.mxu0 0.0
        %272 = vmatpush2.msra.mxu0 0.0
        %273 = vmatprep.subr.mxu0 0.0
        %274 = vmatpush2.msra.mxu0 0.0
        %275 = vmatprep.subr.mxu0 0.0
        %276 = vmatpush2.msra.mxu0 0.0
        %277 = vmatprep.subr.mxu0 0.0
        %278 = vmatpush2.msra.mxu0 0.0
        %279 = vmatprep.subr.mxu0 0.0
        %280 = vmatpush2.msra.mxu0 0.0
        %281 = vmatprep.subr.mxu0 0.0
        %282 = vmatpush2.msra.mxu0 0.0
        %283 = vmatprep.subr.mxu0 0.0
        %284 = vmatpush2.msra.mxu0 0.0
        %285 = vmatprep.subr.mxu0 0.0
        %286 = vmatpush2.msra.mxu0 0.0
        %287 = vmatprep.subr.mxu0 0.0
        %288 = vmatpush2.msra.mxu0 0.0
        %289 = vmatprep.subr.mxu0 0.0
        %290 = vmatpush2.msra.mxu0 0.0
        %291 = vmatprep.mubr.f32.mxu0 0.0
        %292 = vmatmul.mubr.f32.gmra.mxu0 %v225
        %v293 = vpop.f32.mrf.mxu0
        %v294 = vadd.f32 %v222, %v293
        %v295 = vpop.f32.mrf.mxu0
        %296 = vdwg.mxu0
        %vm297 = vcmask 523264
        %v298 = vsel %vm297, %v294, 0.0
        %299 = vadd.xlane.f32.xlu0 %v298
        %v300 = vpop.xlane.xlu0 %299
        %v301 = vrcp.pop 64.0
        %v302 = vmul.f32 %v300, %v301
        %v303 = vsub.f32 %v294, %v302
        %v304 = vmul.f32 %v303, %v303
        %v305 = vsel %vm297, %v304, 0.0
        %306 = vadd.xlane.f32.xlu0 %v305
        %v307 = vpop.xlane.xlu0 %306
        %v308 = vmul.f32 %v307, %v301
        %v309 = vadd.f32 %v308, 1e-12
        %v310 = vrsqrt.pop %v309
        %v311 = vmul.f32 %v303, %v310
        %v312 = vlaneseq
        %v313 = vshrl.u32 %v312, 7
        %v314 = vsub.s32 1, %v313
        %v315 = vrot.slane %v218, %v314
        %v316 = vmul.f32 %v311, %v315
        %v317 = vlaneseq
        %v318 = vshrl.u32 %v317, 7
        %v319 = vsub.s32 2, %v318
        %v320 = vrot.slane %v218, %v319
        %v321 = vadd.f32 %v316, %v320
        %322 = vst.msk [vmem:[%s212] sm:$0xff] %vm297, %v321
        %s323 = sand.u32 %s97, 1
        %s324 = scalar_lea.sflag [#allocation4], %s323
        %s325 = sand.u32 %s97, 1
        %s326 = smul.addr %s325, 8
        %s327 = scalar_lea.vmem [#allocation8], %s326
        // Predicated region
        $region45: #{tpu_custom_call.1} parent=31 // pred_check
          %p328 = pneg %p107
        $region46: #{tpu_custom_call.1} parent=31 // pred_check_branch
          %330 = sbr.rel (%p328) target = $region48
        $region47: #{tpu_custom_call.1} parent=31 // pred_region
          %s332 = ssub.s32 128, 128
          %333 = vsyncadd %s324, %s332
          %s334 = smul.addr %s21, 128
          %s335 = scalar_lea.hbm %s3, %s334
          %s337 = sshll.u32 %s327, 4
          %s338 = int_to_ptr.vmem [resolvable:$true] %s337
          %340 = dma.vmem_to_hbm [thread:$0]  %s338, 128, %s335, %s324
        $region48: #{tpu_custom_call.1} parent=31 // pred_fallthru
          _
      $region32: #{tpu_custom_call.1} parent=5 // pred_fallthru
        _
      %p341 = scmp.le.s32.totalorder 2, %s16
      // Predicated region
      $region49: #{tpu_custom_call.1} parent=5 // pred_check
        %p342 = pneg %p341
      $region50: #{tpu_custom_call.1} parent=5 // pred_check_branch
        %344 = sbr.rel (%p342) target = $region52
      $region51: #{tpu_custom_call.1} parent=5 // pred_region
        %s345 = ssub.s32 %s16, 2
        // Predicated region
        $region53: #{tpu_custom_call.1} parent=51 // pred_check
          %p346 = pneg %p113
        $region54: #{tpu_custom_call.1} parent=51 // pred_check_branch
          %348 = sbr.rel (%p346) target = $region56
        $region55: #{tpu_custom_call.1} parent=51 // pred_region
          %s349 = sand.u32 %s98, 1
          %s350 = scalar_lea.sflag [#allocation4], %s349
          %s351 = sand.u32 %s98, 1
          %s352 = smul.addr %s351, 8
          %s353 = scalar_lea.vmem [#allocation8], %s352
          %354 = dma.done %s350, 128
        $region56: #{tpu_custom_call.1} parent=51 // pred_fallthru
          _
      $region52: #{tpu_custom_call.1} parent=5 // pred_fallthru
        _
    $region6: #{tpu_custom_call.1} parent=1 // loop_footer
      %s20 = sadd.s32 1, %s16
    $region7: #{tpu_custom_call.1} parent=1 // loop_footer_branch
      %15 = sbr.rel target = $region3
    $region8: #{tpu_custom_call.1} parent=1 // loop_exit
      _
    %355 = vsyncpa [#allocation3], 1
    %s356 = scalar_lea.sflag [#allocation3], 1
    %357 = vsyncpa %s356, 1
    %358 = vsyncpa [#allocation6], 1
    %359 = vsyncpa [#allocation4], 1
    %s360 = scalar_lea.sflag [#allocation4], 1
    %361 = vsyncpa %s360, 1

// kernel: tpu_custom_call.1
$region0: #{tpu_custom_call.1}
  #allocation0 [shape = 'u32[]', space=smem, size = 0x4, offset = 0x4, fixed_abs, tag = 'smem constant byte address 0x4 - core index']
  #allocation1 [shape = 'u32[144,128]{1,0:T(1,128)}', space=vmem, size = 0x12000, scoped, tag = 'internal scratch']
  %s0 = inlined_call_operand.hbm [shape: f32[16,32], index: 0, kind: input, shape index: {}]
  %s1 = inlined_call_operand.hbm [shape: f32[32,64], index: 1, kind: input, shape index: {}]
  %s2 = inlined_call_operand.hbm [shape: f32[3,64], index: 2, kind: input, shape index: {}]
  %s3 = inlined_call_operand.hbm [shape: f32[16,64], index: 3, kind: output, shape index: {}]
  %s4 = sld [smem:[#allocation0]]
  $region57: #{tpu_custom_call.1} parent=0
    _
  %s6 = ssub.s32 1, %s4
  %s7 = scalar_select 0, %s6, %s4
  $region1: #{tpu_custom_call.1} parent=0
    #allocation2 [shape = 'u8[8192]{0}', space=vmem, size = 0x2000, scoped, tag = 'input window, operand 0']
    #allocation3 [shape = 's32[2]{0}', space=sflag, size = 0x8, scoped, tag = 'scoped memory for tpu_custom_call.1']
    #allocation4 [shape = 's32[2]{0}', space=sflag, size = 0x8, scoped, tag = 'scoped memory for tpu_custom_call.1']
    #allocation5 [shape = 'u8[16384]{0}', space=vmem, size = 0x4000, scoped, tag = 'input window, operand 1, single buffered']
    #allocation6 [shape = 's32[1]{0}', space=sflag, size = 0x4, scoped, tag = 'scoped memory for tpu_custom_call.1']
    #allocation7 [shape = 'u8[2048]{0}', space=vmem, size = 0x800, scoped, tag = 'input window, operand 2, single buffered']
    #allocation8 [shape = 'u8[8192]{0}', space=vmem, size = 0x2000, scoped, tag = 'output window, operand 0']
    %8 = vsyncpa [#allocation3], 0
    %s9 = scalar_lea.sflag [#allocation3], 1
    %10 = vsyncpa %s9, 0
    %11 = vsyncpa [#allocation6], 0
    %12 = vsyncpa [#allocation4], 0
    %s13 = scalar_lea.sflag [#allocation4], 1
    %14 = vsyncpa %s13, 0
    loop: start=0, step=1, limit=4
    $region2: #{tpu_custom_call.1} parent=1 // loop_pre_header
      _
    $region3: #{tpu_custom_call.1} parent=1 // loop_header
      %s16 = sphi 0, %s20
      %p17 = scmp.ge.s32.totalorder %s16, 4
      %s26 = sphi 0, %s28
      %s29 = sphi 0, %s26
      %s30 = sphi 0, %s29
      %s46 = sphi 0, %s30
      %s50 = sphi 0, %s50
      %s52 = sphi 0, %s50
      %s53 = sphi 0, %s52
      %s67 = sphi 0, %s53
      %s71 = sphi 0, %s71
      %s73 = sphi 0, %s71
      %s74 = sphi 0, %s73
      %s88 = sphi 0, %s74
      %s94 = sphi 0, %s96
      %s97 = sphi 0, %s94
      %s98 = sphi 0, %s97
      %s114 = sphi 0, %s98
    $region4: #{tpu_custom_call.1} parent=1 // loop_header_branch
      %19 = sbr.rel (%p17) target = $region8
    $region5: #{tpu_custom_call.1} parent=1 // loop_body
      %s21 = ssub.s32 %s16, 1
      %s22 = ssub.s32 %s16, 2
      %s23 = sadd.s32 %s16, 1
      %s24 = ssub.s32 %s16, %s23
      %p25 = scmp.eq.s32.totalorder %s24, 0
      %s27 = sadd.s32 %s26, 1
      %s28 = scalar_select %p25, %s26, %s27
      %p31 = pneg %p25
      %p32 = scmp.eq.s32.totalorder %s16, 1
      %p33 = por %p31, %p32
      %p34 = scmp.ne.s32.totalorder %s26, %s29
      %p35 = scmp.eq.s32.totalorder %s16, 0
      %p36 = por %p34, %p35
      %p37 = scmp.ne.s32.totalorder %s26, %s29
      %p38 = scmp.eq.s32.totalorder %s21, 1
      %p39 = por %p37, %p38
      %p40 = scmp.ne.s32.totalorder %s29, %s30
      %p41 = scmp.eq.s32.totalorder %s21, 0
      %p42 = por %p40, %p41
      %p43 = scmp.ne.s32.totalorder %s29, %s30
      %p44 = scmp.eq.s32.totalorder %s22, 1
      %p45 = por %p43, %p44
      %p47 = scmp.ne.s32.totalorder %s30, %s46
      %p48 = scmp.eq.s32.totalorder %s22, 0
      %p49 = por %p47, %p48
      %s51 = sadd.s32 %s50, 1
      %p54 = scmp.eq.s32.totalorder %s16, 1
      %p55 = scmp.ne.s32.totalorder %s50, %s52
      %p56 = scmp.eq.s32.totalorder %s16, 0
      %p57 = por %p55, %p56
      %p58 = scmp.ne.s32.totalorder %s50, %s52
      %p59 = scmp.eq.s32.totalorder %s21, 1
      %p60 = por %p58, %p59
      %p61 = scmp.ne.s32.totalorder %s52, %s53
      %p62 = scmp.eq.s32.totalorder %s21, 0
      %p63 = por %p61, %p62
      %p64 = scmp.ne.s32.totalorder %s52, %s53
      %p65 = scmp.eq.s32.totalorder %s22, 1
      %p66 = por %p64, %p65
      %p68 = scmp.ne.s32.totalorder %s53, %s67
      %p69 = scmp.eq.s32.totalorder %s22, 0
      %p70 = por %p68, %p69
      %s72 = sadd.s32 %s71, 1
      %p75 = scmp.eq.s32.totalorder %s16, 1
      %p76 = scmp.ne.s32.totalorder %s71, %s73
      %p77 = scmp.eq.s32.totalorder %s16, 0
      %p78 = por %p76, %p77
      %p79 = scmp.ne.s32.totalorder %s71, %s73
      %p80 = scmp.eq.s32.totalorder %s21, 1
      %p81 = por %p79, %p80
      %p82 = scmp.ne.s32.totalorder %s73, %s74
      %p83 = scmp.eq.s32.totalorder %s21, 0
      %p84 = por %p82, %p83
      %p85 = scmp.ne.s32.totalorder %s73, %s74
      %p86 = scmp.eq.s32.totalorder %s22, 1
      %p87 = por %p85, %p86
      %p89 = scmp.ne.s32.totalorder %s74, %s88
      %p90 = scmp.eq.s32.totalorder %s22, 0
      %p91 = por %p89, %p90
      %s92 = ssub.s32 %s16, %s23
      %p93 = scmp.eq.s32.totalorder %s92, 0
      %s95 = sadd.s32 %s94, 1
      %s96 = scalar_select %p93, %s94, %s95
      %p99 = pneg %p93
      %p100 = scmp.eq.s32.totalorder %s16, 1
      %p101 = por %p99, %p100
      %p102 = scmp.ne.s32.totalorder %s94, %s97
      %p103 = scmp.eq.s32.totalorder %s16, 0
      %p104 = por %p102, %p103
      %p105 = scmp.ne.s32.totalorder %s94, %s97
      %p106 = scmp.eq.s32.totalorder %s21, 1
      %p107 = por %p105, %p106
      %p108 = scmp.ne.s32.totalorder %s97, %s98
      %p109 = scmp.eq.s32.totalorder %s21, 0
      %p110 = por %p108, %p109
      %p111 = scmp.ne.s32.totalorder %s97, %s98
      %p112 = scmp.eq.s32.totalorder %s22, 1
      %p113 = por %p111, %p112
      %p115 = scmp.ne.s32.totalorder %s98, %s114
      %p116 = scmp.eq.s32.totalorder %s22, 0
      %p117 = por %p115, %p116
      %p118 = scmp.le.s32.totalorder 1, %s16
      %p119 = scmp.lt.s32.totalorder %s16, 3
      %p120 = pnand %p118, %p119
      %p121 = pneg %p120
      // Predicated region
      $region9: #{tpu_custom_call.1} parent=5 // pred_check
        _
      $region10: #{tpu_custom_call.1} parent=5 // pred_check_branch
        %123 = sbr.rel (%p120) target = $region12
      $region11: #{tpu_custom_call.1} parent=5 // pred_region
        %s124 = ssub.s32 %s16, 1
        // Predicated region
        $region13: #{tpu_custom_call.1} parent=11 // pred_check
          %p125 = pneg %p63
        $region14: #{tpu_custom_call.1} parent=11 // pred_check_branch
          %127 = sbr.rel (%p125) target = $region16
        $region15: #{tpu_custom_call.1} parent=11 // pred_region
          %s129 = ssub.s32 512, 512
          %130 = vsyncadd [#allocation6], %s129
          %s131 = sshll.u32 [#allocation5], 4
          %s132 = int_to_ptr.vmem [resolvable:$true] %s131
          %137 = dma.hbm_to_vmem [thread:$0]  %s1, 512, %s132, [#allocation6], 128, 128, 8
        $region16: #{tpu_custom_call.1} parent=11 // pred_fallthru
          _
        // Predicated region
        $region17: #{tpu_custom_call.1} parent=11 // pred_check
          %p138 = pneg %p84
        $region18: #{tpu_custom_call.1} parent=11 // pred_check_branch
          %140 = sbr.rel (%p138) target = $region20
        $region19: #{tpu_custom_call.1} parent=11 // pred_region
          %s142 = ssub.s32 64, 64
          %143 = vsyncadd [#allocation6], %s142
          %s145 = sshll.u32 [#allocation7], 4
          %s146 = int_to_ptr.vmem [resolvable:$true] %s145
          %148 = dma.hbm_to_vmem [thread:$0]  %s2, 64, %s146, [#allocation6]
        $region20: #{tpu_custom_call.1} parent=11 // pred_fallthru
          _
      $region12: #{tpu_custom_call.1} parent=5 // pred_fallthru
        _
      %p149 = scmp.lt.s32.totalorder %s16, 2
      // Predicated region
      $region21: #{tpu_custom_call.1} parent=5 // pred_check
        %p150 = pneg %p149
      $region22: #{tpu_custom_call.1} parent=5 // pred_check_branch
        %152 = sbr.rel (%p150) target = $region24
      $region23: #{tpu_custom_call.1} parent=5 // pred_region
        // Predicated region
        $region25: #{tpu_custom_call.1} parent=23 // pred_check
          %p153 = pneg %p36
        $region26: #{tpu_custom_call.1} parent=23 // pred_check_branch
          %155 = sbr.rel (%p153) target = $region28
        $region27: #{tpu_custom_call.1} parent=23 // pred_region
          %s156 = sand.u32 %s26, 1
          %s157 = scalar_lea.sflag [#allocation3], %s156
          %s158 = sand.u32 %s26, 1
          %s159 = smul.addr %s158, 8
          %s160 = scalar_lea.vmem [#allocation2], %s159
          %s162 = ssub.s32 128, 128
          %163 = vsyncadd %s157, %s162
          %s164 = smul.addr %s16, 128
          %s165 = scalar_lea.hbm %s0, %s164
          %s167 = sshll.u32 %s160, 4
          %s168 = int_to_ptr.vmem [resolvable:$true] %s167
          %170 = dma.hbm_to_vmem [thread:$0]  %s165, 128, %s168, %s157
        $region28: #{tpu_custom_call.1} parent=23 // pred_fallthru
          _
      $region24: #{tpu_custom_call.1} parent=5 // pred_fallthru
        _
      %p171 = scmp.le.s32.totalorder 1, %s16
      %p172 = scmp.lt.s32.totalorder %s16, 3
      %p173 = pnand %p171, %p172
      %p174 = pneg %p173
      // Predicated region
      $region29: #{tpu_custom_call.1} parent=5 // pred_check
        _
      $region30: #{tpu_custom_call.1} parent=5 // pred_check_branch
        %176 = sbr.rel (%p173) target = $region32
      $region31: #{tpu_custom_call.1} parent=5 // pred_region
        %s177 = ssub.s32 %s16, 1
        %s178 = sand.u32 %s29, 1
        %s179 = scalar_lea.sflag [#allocation3], %s178
        %s180 = sand.u32 %s29, 1
        %s181 = smul.addr %s180, 8
        %s182 = scalar_lea.vmem [#allocation2], %s181
        // Predicated region
        $region33: #{tpu_custom_call.1} parent=31 // pred_check
          %p183 = pneg %p42
        $region34: #{tpu_custom_call.1} parent=31 // pred_check_branch
          %185 = sbr.rel (%p183) target = $region36
        $region35: #{tpu_custom_call.1} parent=31 // pred_region
          %186 = dma.done %s179, 128
        $region36: #{tpu_custom_call.1} parent=31 // pred_fallthru
          _
        // Predicated region
        $region37: #{tpu_custom_call.1} parent=31 // pred_check
          %p187 = pneg %p63
        $region38: #{tpu_custom_call.1} parent=31 // pred_check_branch
          %189 = sbr.rel (%p187) target = $region40
        $region39: #{tpu_custom_call.1} parent=31 // pred_region
          %190 = dma.done [#allocation6], 512
        $region40: #{tpu_custom_call.1} parent=31 // pred_fallthru
          _
        // Predicated region
        $region41: #{tpu_custom_call.1} parent=31 // pred_check
          %p191 = pneg %p84
        $region42: #{tpu_custom_call.1} parent=31 // pred_check_branch
          %193 = sbr.rel (%p191) target = $region44
        $region43: #{tpu_custom_call.1} parent=31 // pred_region
          %194 = dma.done [#allocation6], 64
        $region44: #{tpu_custom_call.1} parent=31 // pred_fallthru
          _
        %s195 = sand.u32 %s29, 1
        %s196 = scalar_lea.sflag [#allocation3], %s195
        %s197 = sand.u32 %s29, 1
        %s198 = smul.addr %s197, 8
        %s199 = scalar_lea.vmem [#allocation2], %s198
        %p200 = pneg %p42
        %p201 = pneg %p39
        %p202 = pneg %p63
        %p203 = pneg %p60
        %p204 = pneg %p84
        %p205 = pneg %p81
        %p206 = pneg %p110
        %p207 = pneg %p107
        %s208 = sand.u32 %s97, 1
        %s209 = scalar_lea.sflag [#allocation4], %s208
        %s210 = sand.u32 %s97, 1
        %s211 = smul.addr %s210, 8
        %s212 = scalar_lea.vmem [#allocation8], %s211
        %v213 = vld [vmem:[%s182] sm:$0xff]
        %v214 = vld [vmem:[#allocation5] sm:$0xff]
        %v215 = vld [vmem:[#allocation5 + $0x8] sm:$0xff]
        %v216 = vld [vmem:[#allocation5 + $0x10] sm:$0xff]
        %v217 = vld [vmem:[#allocation5 + $0x18] sm:$0xff]
        %v218 = vld [vmem:[#allocation7] sm:$0x7]
        %v219 = vlaneseq
        %v220 = vshrl.u32 %v219, 7
        %v221 = vsub.s32 0, %v220
        %v222 = vrot.slane %v218, %v221
        %vm223 = vcmask 261120
        %v225 = vsel %vm223, %v213, 0
        %227 = vmatprep.subr.mxu0 0.0
        %228 = vmatpush1.msra.mxu0 0.0
        %229 = vmatprep.subr.mxu0 0.0
        %230 = vmatpush1.msra.mxu0 0.0
        %231 = vmatprep.subr.mxu0 0.0
        %232 = vmatpush1.msra.mxu0 0.0
        %233 = vmatprep.subr.mxu0 0.0
        %234 = vmatpush1.msra.mxu0 0.0
        %235 = vmatprep.subr.mxu0 0.0
        %236 = vmatpush1.msra.mxu0 0.0
        %237 = vmatprep.subr.mxu0 0.0
        %238 = vmatpush1.msra.mxu0 0.0
        %239 = vmatprep.subr.mxu0 0.0
        %240 = vmatpush1.msra.mxu0 0.0
        %241 = vmatprep.subr.mxu0 0.0
        %242 = vmatpush1.msra.mxu0 0.0
        %243 = vmatprep.subr.mxu0 0.0
        %244 = vmatpush1.msra.mxu0 0.0
        %245 = vmatprep.subr.mxu0 0.0
        %246 = vmatpush1.msra.mxu0 0.0
        %247 = vmatprep.subr.mxu0 0.0
        %248 = vmatpush1.msra.mxu0 0.0
        %249 = vmatprep.subr.mxu0 0.0
        %250 = vmatpush1.msra.mxu0 0.0
        %251 = vmatprep.subr.mxu0 0.0
        %252 = vmatpush1.msra.mxu0 %v217
        %253 = vmatprep.subr.mxu0 0.0
        %254 = vmatpush1.msra.mxu0 %v216
        %255 = vmatprep.subr.mxu0 0.0
        %256 = vmatpush1.msra.mxu0 %v215
        %257 = vmatprep.subr.mxu0 0.0
        %258 = vmatpush1.msra.mxu0 %v214
        %259 = vmatprep.subr.mxu0 0.0
        %260 = vmatpush2.msra.mxu0 0.0
        %261 = vmatprep.subr.mxu0 0.0
        %262 = vmatpush2.msra.mxu0 0.0
        %263 = vmatprep.subr.mxu0 0.0
        %264 = vmatpush2.msra.mxu0 0.0
        %265 = vmatprep.subr.mxu0 0.0
        %266 = vmatpush2.msra.mxu0 0.0
        %267 = vmatprep.subr.mxu0 0.0
        %268 = vmatpush2.msra.mxu0 0.0
        %269 = vmatprep.subr.mxu0 0.0
        %270 = vmatpush2.msra.mxu0 0.0
        %271 = vmatprep.subr.mxu0 0.0
        %272 = vmatpush2.msra.mxu0 0.0
        %273 = vmatprep.subr.mxu0 0.0
        %274 = vmatpush2.msra.mxu0 0.0
        %275 = vmatprep.subr.mxu0 0.0
        %276 = vmatpush2.msra.mxu0 0.0
        %277 = vmatprep.subr.mxu0 0.0
        %278 = vmatpush2.msra.mxu0 0.0
        %279 = vmatprep.subr.mxu0 0.0
        %280 = vmatpush2.msra.mxu0 0.0
        %281 = vmatprep.subr.mxu0 0.0
        %282 = vmatpush2.msra.mxu0 0.0
        %283 = vmatprep.subr.mxu0 0.0
        %284 = vmatpush2.msra.mxu0 0.0
        %285 = vmatprep.subr.mxu0 0.0
        %286 = vmatpush2.msra.mxu0 0.0
        %287 = vmatprep.subr.mxu0 0.0
        %288 = vmatpush2.msra.mxu0 0.0
        %289 = vmatprep.subr.mxu0 0.0
        %290 = vmatpush2.msra.mxu0 0.0
        %291 = vmatprep.mubr.f32.mxu0 0.0
        %292 = vmatmul.mubr.f32.gmra.mxu0 %v225
        %v293 = vpop.f32.mrf.mxu0
        %v294 = vadd.f32 %v222, %v293
        %v295 = vpop.f32.mrf.mxu0
        %296 = vdwg.mxu0
        %vm297 = vcmask 523264
        %v298 = vsel %vm297, %v294, 0.0
        %299 = vadd.xlane.f32.xlu0 %v298
        %v300 = vpop.xlane.xlu0 %299
        %v301 = vrcp.pop 64.0
        %v302 = vmul.f32 %v300, %v301
        %v303 = vsub.f32 %v294, %v302
        %v304 = vmul.f32 %v303, %v303
        %v305 = vsel %vm297, %v304, 0.0
        %306 = vadd.xlane.f32.xlu0 %v305
        %v307 = vpop.xlane.xlu0 %306
        %v308 = vmul.f32 %v307, %v301
        %v309 = vadd.f32 %v308, 1e-12
        %v310 = vrsqrt.pop %v309
        %v311 = vmul.f32 %v303, %v310
        %v312 = vlaneseq
        %v313 = vshrl.u32 %v312, 7
        %v314 = vsub.s32 1, %v313
        %v315 = vrot.slane %v218, %v314
        %v316 = vmul.f32 %v311, %v315
        %v317 = vlaneseq
        %v318 = vshrl.u32 %v317, 7
        %v319 = vsub.s32 2, %v318
        %v320 = vrot.slane %v218, %v319
        %v321 = vadd.f32 %v316, %v320
        %322 = vst.msk [vmem:[%s212] sm:$0xff] %vm297, %v321
        %s323 = sand.u32 %s97, 1
        %s324 = scalar_lea.sflag [#allocation4], %s323
        %s325 = sand.u32 %s97, 1
        %s326 = smul.addr %s325, 8
        %s327 = scalar_lea.vmem [#allocation8], %s326
        // Predicated region
        $region45: #{tpu_custom_call.1} parent=31 // pred_check
          %p328 = pneg %p107
        $region46: #{tpu_custom_call.1} parent=31 // pred_check_branch
          %330 = sbr.rel (%p328) target = $region48
        $region47: #{tpu_custom_call.1} parent=31 // pred_region
          %s332 = ssub.s32 128, 128
          %333 = vsyncadd %s324, %s332
          %s334 = smul.addr %s21, 128
          %s335 = scalar_lea.hbm %s3, %s334
          %s337 = sshll.u32 %s327, 4
          %s338 = int_to_ptr.vmem [resolvable:$true] %s337
          %340 = dma.vmem_to_hbm [thread:$0]  %s338, 128, %s335, %s324
        $region48: #{tpu_custom_call.1} parent=31 // pred_fallthru
          _
      $region32: #{tpu_custom_call.1} parent=5 // pred_fallthru
        _
      %p341 = scmp.le.s32.totalorder 2, %s16
      // Predicated region
      $region49: #{tpu_custom_call.1} parent=5 // pred_check
        %p342 = pneg %p341
      $region50: #{tpu_custom_call.1} parent=5 // pred_check_branch
        %344 = sbr.rel (%p342) target = $region52
      $region51: #{tpu_custom_call.1} parent=5 // pred_region
        %s345 = ssub.s32 %s16, 2
        // Predicated region
        $region53: #{tpu_custom_call.1} parent=51 // pred_check
          %p346 = pneg %p113
        $region54: #{tpu_custom_call.1} parent=51 // pred_check_branch
          %348 = sbr.rel (%p346) target = $region56
        $region55: #{tpu_custom_call.1} parent=51 // pred_region
          %s349 = sand.u32 %s98, 1
          %s350 = scalar_lea.sflag [#allocation4], %s349
          %s351 = sand.u32 %s98, 1
          %s352 = smul.addr %s351, 8
          %s353 = scalar_lea.vmem [#allocation8], %s352
          %354 = dma.done %s350, 128
        $region56: #{tpu_custom_call.1} parent=51 // pred_fallthru
          _
      $region52: #{tpu_custom_call.1} parent=5 // pred_fallthru
        _
    $region6: #{tpu_custom_call.1} parent=1 // loop_footer
      %s20 = sadd.s32 1, %s16
    $region7: #{tpu_custom_call.1} parent=1 // loop_footer_branch
      %15 = sbr.rel target = $region3
    $region8: #{tpu_custom_call.1} parent=1 // loop_exit
      _
    %355 = vsyncpa [#allocation3], 1
    %s356 = scalar_lea.sflag [#allocation3], 1
    %357 = vsyncpa %s356, 1
    %358 = vsyncpa [#allocation6], 1
    %359 = vsyncpa [#allocation4], 1
    %s360 = scalar_lea.sflag [#allocation4], 1
    %361 = vsyncpa %s360, 1

</llo_original>
